<compile_context>
chip_gen: v5e
topology: v5e:2x2
jax: 0.10.0
libtpu: 0.0.40
codegen_flags: <defaults>
</compile_context>

<pallas_src>
import jax
import jax.numpy as jnp
from jax.experimental import pallas as pl
from jax.experimental.pallas import tpu as pltpu


def _round_up(n, m):
    return -(-n // m) * m


# ---------------------------------------------------------------------------
# Kernel 1: parameter decode (tanh / sigmoid affines), three static regions.
# ---------------------------------------------------------------------------
def _make_decode_kernel(r_pts, r_w, r_c, half, wscale):
    """r_pts / r_w / r_c: rows (each a multiple of 8) of the points / widths /
    colors regions in the packed (R, 128) buffer.  half = imsize//2,
    wscale = max_width - 1."""

    def kernel(params_ref, dec_ref):
        # points: tanh(x) * half + half
        pts = params_ref[0:r_pts, :]
        dec_ref[0:r_pts, :] = jnp.tanh(pts) * half + half

        # sigmoid via the EUP tanh: sigmoid(x) = 0.5 * (1 + tanh(x/2))
        # widths: wscale * sigmoid(x) + 1
        w = params_ref[r_pts:r_pts + r_w, :]
        dec_ref[r_pts:r_pts + r_w, :] = (0.5 * wscale) * (jnp.tanh(0.5 * w) + 1.0) + 1.0

        # colors: sigmoid(x)      (padding region decodes to 0.5 — never consumed raw)
        c = params_ref[r_pts + r_w:r_pts + r_w + r_c, :]
        dec_ref[r_pts + r_w:r_pts + r_w + r_c, :] = 0.5 * (jnp.tanh(0.5 * c) + 1.0)

    return kernel


def _decode_params(packed, *, r_pts, r_w, r_c, half, wscale):
    R, L = packed.shape
    return pl.pallas_call(
        _make_decode_kernel(r_pts, r_w, r_c, half, wscale),
        out_shape=jax.ShapeDtypeStruct((R, L), jnp.float32),
    )(packed)


# ---------------------------------------------------------------------------
# Kernel 2: alpha-composite over white, sublane-dense (4, t, 128) blocks.
# ---------------------------------------------------------------------------
def _composite_kernel(raster_ref, rgb_ref):
    rgba = raster_ref[...]                       # (4, t, 128)
    alpha = rgba[3:4]                            # (1, t, 128) — non-minor-axis broadcast
    rgb_ref[...] = alpha * rgba[0:3] + (1.0 - alpha)   # single unmasked store


def _composite_over_white(raster3d, tile_rows):
    """raster3d: (4, P, 128) f32, P a multiple of tile_rows (tile_rows % 8 == 0)."""
    _, P, L = raster3d.shape
    grid = (P // tile_rows,)
    return pl.pallas_call(
        _composite_kernel,
        out_shape=jax.ShapeDtypeStruct((3, P, L), jnp.float32),
        grid=grid,
        in_specs=[pl.BlockSpec((4, tile_rows, L), lambda i: (0, i, 0))],
        out_specs=pl.BlockSpec((3, tile_rows, L), lambda i: (0, i, 0)),
        compiler_params=pltpu.CompilerParams(
            # Decode lives in its own call, so the pixel axis is fully
            # independent -> shard across TensorCores on v7x.
            dimension_semantics=("parallel",),
            # ~7 MiB double-buffered at tile_rows=1024; explicit limit avoids a
            # silent fallback if tiles grow (safe on all gens: <= physical VMEM).
            vmem_limit_bytes=32 << 20,
        ),
    )(raster3d)


def _pick_tile_rows(P, cap=1024):
    """Tile of the (P, 128) pixel-row axis: full raster in one block when small,
    else `cap` rows (2 MiB input block).  Always a multiple of 8."""
    if P <= cap:
        return _round_up(P, 8)
    return cap


# ---------------------------------------------------------------------------
# Module wrapper
# ---------------------------------------------------------------------------
class RealOptimizePallas:
    def __init__(self, key, imsize=32, paths=16, segments=3, samples=2, max_width=2):
        self.imsize = imsize
        self.paths = paths
        self.segments = segments
        self.samples = samples
        self.max_width = max_width
        self.pts_per_path = segments * 3 + 1
        self.n_pts = 2 * paths * self.pts_per_path
        self.n_w = paths
        self.n_c = 4 * paths

        # Rows per packed region, each aligned to full (8, 128) vregs.
        self.r_pts = _round_up(max(1, -(-self.n_pts // 128)), 8)
        self.r_w = _round_up(max(1, -(-self.n_w // 128)), 8)
        self.r_c = _round_up(max(1, -(-self.n_c // 128)), 8)

        # Static composite tiling (imsize is fixed per instance).
        HW = imsize * imsize
        self.hw_pad = _round_up(HW, 128)
        self.p_rows = self.hw_pad // 128
        self.tile_rows = _pick_tile_rows(self.p_rows)
        self.p_rows_pad = _round_up(self.p_rows, self.tile_rows)

        k1, k2, k3 = jax.random.split(key, 3)
        # torch.rand -> uniform [0, 1)
        self.points = jax.random.uniform(k1, (self.n_pts,), jnp.float32)
        self.widths = jax.random.uniform(k2, (self.n_w,), jnp.float32)
        self.colors = jax.random.uniform(k3, (self.n_c,), jnp.float32)

        # One XLA program for the whole forward: packing, decode, composite,
        # and output slicing all fuse (no per-call tiny dispatches).
        self._forward_jit = jax.jit(self._forward_impl)

    @staticmethod
    def _pack_region(v, rows):
        return jnp.pad(v.astype(jnp.float32), (0, rows * 128 - v.shape[0])).reshape(rows, 128)

    def _forward_impl(self, points, widths, colors, rgba_raster_chw):
        H = W = self.imsize
        HW = H * W

        # ---- parameter decode ----
        packed = jnp.concatenate([
            self._pack_region(points, self.r_pts),
            self._pack_region(widths, self.r_w),
            self._pack_region(colors, self.r_c),
        ], axis=0)                                              # (R, 128)
        dec = _decode_params(
            packed,
            r_pts=self.r_pts, r_w=self.r_w, r_c=self.r_c,
            half=float(self.imsize // 2), wscale=float(self.max_width - 1))

        predict_points = dec[0:self.r_pts].reshape(-1)[:self.n_pts] \
            .reshape(self.paths, self.pts_per_path, 2)
        predict_widths = dec[self.r_pts:self.r_pts + self.r_w].reshape(-1)[:self.n_w]
        predict_colors = dec[self.r_pts + self.r_w:self.r_pts + self.r_w + self.r_c] \
            .reshape(-1)[:self.n_c].reshape(self.paths, 4)

        # TODO(synk): differentiable rasterization of predict_* would go here.

        # ---- alpha-composite over white, sublane-dense blocking ----
        flat = rgba_raster_chw.astype(jnp.float32).reshape(4, HW)
        if self.hw_pad != HW:
            flat = jnp.pad(flat, ((0, 0), (0, self.hw_pad - HW)))
        r3 = flat.reshape(4, self.p_rows, 128)
        if self.p_rows_pad != self.p_rows:
            r3 = jnp.pad(r3, ((0, 0), (0, self.p_rows_pad - self.p_rows), (0, 0)))

        rgb3 = _composite_over_white(r3, self.tile_rows)        # (3, P_pad, 128)
        rgb = rgb3.reshape(3, self.p_rows_pad * 128)[:, :HW].reshape(3, H, W)

        return rgb[None], predict_points, predict_widths, predict_colors

    def forward(self, x, rgba_raster_chw):
        """x is unused (matches the PyTorch forward).  rgba_raster_chw: (4, H, W)
        planar RGBA raster standing in for the pydiffvg rasterizer output."""
        del x
        assert rgba_raster_chw.shape == (4, self.imsize, self.imsize)
        return self._forward_jit(self.points, self.widths, self.colors, rgba_raster_chw)


if __name__ == "__main__":
    key = jax.random.PRNGKey(0)
    k_model, k_x, k_raster = jax.random.split(key, 3)

    imsize, paths, segments, max_width = 32, 16, 3, 2
    model = RealOptimizePallas(k_model, imsize=imsize, paths=paths,
                               segments=segments, samples=2, max_width=max_width)

    # Input x (ignored by forward, as in the PyTorch module).
    x = jax.random.uniform(k_x, (2, 4, 16, 16), jnp.float32)

    # Deterministic synthetic planar RGBA raster standing in for the pydiffvg render.
    rgba_raster = jax.random.uniform(k_raster, (4, imsize, imsize), jnp.float32)

    out, p_pts, p_w, p_c = model.forward(x, rgba_raster)
    out = jax.block_until_ready(out)

    # Pure-jnp reference.
    ref_pts = (jnp.tanh(model.points) * (imsize // 2) + imsize // 2)
    ref_pts = ref_pts.reshape(paths, segments * 3 + 1, 2)
    ref_w = (max_width - 1) * jax.nn.sigmoid(model.widths) + 1.0
    ref_c = jax.nn.sigmoid(model.colors).reshape(paths, 4)
    a = rgba_raster[3:4]
    ref_out = (a * rgba_raster[:3] + (1.0 - a))[None]

    assert out.shape == (1, 3, imsize, imsize)
    assert jnp.allclose(out, ref_out, atol=1e-5)
    assert jnp.allclose(p_pts, ref_pts, atol=1e-4)
    assert jnp.allclose(p_w, ref_w, atol=1e-4)
    assert jnp.allclose(p_c, ref_c, atol=1e-4)

    print("KERNEL_OK")
</pallas_src>

<mosaic_0001>
module attributes {stable_mosaic.version = 11 : i64} {
  func.func @kernel(%arg0: memref<24x128xf32, #tpu.memory_space<vmem>>, %arg1: memref<24x128xf32, #tpu.memory_space<vmem>>) attributes {dimension_semantics = [], scalar_prefetch = 0 : i64, scratch_operands = 0 : i64, tpu.core_type = #tpu.core_type<tc>} {
    %c0 = arith.constant 0 : index
    %c0_0 = arith.constant 0 : index
    %0 = vector.load %arg0[%c0, %c0_0] : memref<24x128xf32, #tpu.memory_space<vmem>>, vector<8x128xf32>
    %1 = math.tanh %0 : vector<8x128xf32>
    %cst = arith.constant 1.600000e+01 : f32
    %2 = vector.broadcast %cst : f32 to vector<8x128xf32>
    %3 = arith.mulf %1, %2 : vector<8x128xf32>
    %cst_1 = arith.constant 1.600000e+01 : f32
    %4 = vector.broadcast %cst_1 : f32 to vector<8x128xf32>
    %5 = arith.addf %3, %4 : vector<8x128xf32>
    %c0_2 = arith.constant 0 : index
    %c0_3 = arith.constant 0 : index
    %6 = vector.load %arg1[%c0_2, %c0_3] : memref<24x128xf32, #tpu.memory_space<vmem>>, vector<8x128xf32>
    tpu.vector_store %arg1[%c0_2, %c0_3], %5 {strides = array<i32>} : memref<24x128xf32, #tpu.memory_space<vmem>>, vector<8x128xf32>,
    %c8 = arith.constant 8 : index
    %c0_4 = arith.constant 0 : index
    %7 = vector.load %arg0[%c8, %c0_4] : memref<24x128xf32, #tpu.memory_space<vmem>>, vector<8x128xf32>
    %cst_5 = arith.constant 5.000000e-01 : f32
    %8 = vector.broadcast %cst_5 : f32 to vector<8x128xf32>
    %9 = arith.mulf %8, %7 : vector<8x128xf32>
    %10 = math.tanh %9 : vector<8x128xf32>
    %cst_6 = arith.constant 1.000000e+00 : f32
    %11 = vector.broadcast %cst_6 : f32 to vector<8x128xf32>
    %12 = arith.addf %10, %11 : vector<8x128xf32>
    %cst_7 = arith.constant 5.000000e-01 : f32
    %13 = vector.broadcast %cst_7 : f32 to vector<8x128xf32>
    %14 = arith.mulf %13, %12 : vector<8x128xf32>
    %cst_8 = arith.constant 1.000000e+00 : f32
    %15 = vector.broadcast %cst_8 : f32 to vector<8x128xf32>
    %16 = arith.addf %14, %15 : vector<8x128xf32>
    %c8_9 = arith.constant 8 : index
    %c0_10 = arith.constant 0 : index
    %17 = vector.load %arg1[%c8_9, %c0_10] : memref<24x128xf32, #tpu.memory_space<vmem>>, vector<8x128xf32>
    tpu.vector_store %arg1[%c8_9, %c0_10], %16 {strides = array<i32>} : memref<24x128xf32, #tpu.memory_space<vmem>>, vector<8x128xf32>,
    %c16 = arith.constant 16 : index
    %c0_11 = arith.constant 0 : index
    %18 = vector.load %arg0[%c16, %c0_11] : memref<24x128xf32, #tpu.memory_space<vmem>>, vector<8x128xf32>
    %cst_12 = arith.constant 5.000000e-01 : f32
    %19 = vector.broadcast %cst_12 : f32 to vector<8x128xf32>
    %20 = arith.mulf %19, %18 : vector<8x128xf32>
    %21 = math.tanh %20 : vector<8x128xf32>
    %cst_13 = arith.constant 1.000000e+00 : f32
    %22 = vector.broadcast %cst_13 : f32 to vector<8x128xf32>
    %23 = arith.addf %21, %22 : vector<8x128xf32>
    %cst_14 = arith.constant 5.000000e-01 : f32
    %24 = vector.broadcast %cst_14 : f32 to vector<8x128xf32>
    %25 = arith.mulf %24, %23 : vector<8x128xf32>
    %c16_15 = arith.constant 16 : index
    %c0_16 = arith.constant 0 : index
    %26 = vector.load %arg1[%c16_15, %c0_16] : memref<24x128xf32, #tpu.memory_space<vmem>>, vector<8x128xf32>
    tpu.vector_store %arg1[%c16_15, %c0_16], %25 {strides = array<i32>} : memref<24x128xf32, #tpu.memory_space<vmem>>, vector<8x128xf32>,
    return
  }
}

module attributes {stable_mosaic.version = 11 : i64} {
  func.func @_composite_kernel(%arg0: i32, %arg1: memref<4x8x128xf32, #tpu.memory_space<vmem>>, %arg2: memref<3x8x128xf32, #tpu.memory_space<vmem>>) attributes {dimension_semantics = [#tpu.dimension_semantics<parallel>], iteration_bounds = array<i64: 1>, scalar_prefetch = 0 : i64, scratch_operands = 0 : i64, tpu.core_type = #tpu.core_type<tc>, window_params = [{transform_indices = @transform_0, window_bounds = array<i64: 4, 8, 128>}, {transform_indices = @transform_1, window_bounds = array<i64: 3, 8, 128>}]} {
    %c0 = arith.constant 0 : index
    %c0_0 = arith.constant 0 : index
    %c0_1 = arith.constant 0 : index
    %0 = vector.load %arg1[%c0, %c0_0, %c0_1] : memref<4x8x128xf32, #tpu.memory_space<vmem>>, vector<4x8x128xf32>
    %1 = vector.extract_strided_slice %0 {offsets = [3, 0, 0], sizes = [1, 8, 128], strides = [1, 1, 1]} : vector<4x8x128xf32> to vector<1x8x128xf32>
    %2 = vector.extract_strided_slice %0 {offsets = [0, 0, 0], sizes = [3, 8, 128], strides = [1, 1, 1]} : vector<4x8x128xf32> to vector<3x8x128xf32>
    %3 = vector.broadcast %1 : vector<1x8x128xf32> to vector<3x8x128xf32>
    %4 = arith.mulf %3, %2 : vector<3x8x128xf32>
    %cst = arith.constant 1.000000e+00 : f32
    %5 = vector.broadcast %cst : f32 to vector<1x8x128xf32>
    %6 = arith.subf %5, %1 : vector<1x8x128xf32>
    %7 = vector.broadcast %6 : vector<1x8x128xf32> to vector<3x8x128xf32>
    %8 = arith.addf %4, %7 : vector<3x8x128xf32>
    %c0_2 = arith.constant 0 : index
    %c0_3 = arith.constant 0 : index
    %c0_4 = arith.constant 0 : index
    %9 = vector.load %arg2[%c0_2, %c0_3, %c0_4] : memref<3x8x128xf32, #tpu.memory_space<vmem>>, vector<3x8x128xf32>
    tpu.vector_store %arg2[%c0_2, %c0_3, %c0_4], %8 {strides = array<i32>} : memref<3x8x128xf32, #tpu.memory_space<vmem>>, vector<3x8x128xf32>,
    return
  }
  func.func @transform_0(%arg0: i32) -> (i32, i32, i32) {
    %c0_i32 = arith.constant 0 : i32
    %c0_i32_0 = arith.constant 0 : i32
    %c0_i32_1 = arith.constant 0 : i32
    return %c0_i32, %arg0, %c0_i32_0 : i32, i32, i32
  }
  func.func @transform_1(%arg0: i32) -> (i32, i32, i32) {
    %c0_i32 = arith.constant 0 : i32
    %c0_i32_0 = arith.constant 0 : i32
    %c0_i32_1 = arith.constant 0 : i32
    return %c0_i32, %arg0, %c0_i32_0 : i32, i32, i32
  }
}

</mosaic_0001>

<llo_original>
// kernel: _forward_impl.2
$region0: #{_forward_impl.2}
  #allocation0 [shape = 'u32[]', space=smem, size = 0x4, offset = 0x4, fixed_abs, tag = 'smem constant byte address 0x4 - core index']
  #allocation1 [shape = 'u32[72,128]{1,0:T(1,128)}', space=vmem, size = 0x9000, scoped, tag = 'internal scratch']
  %s0 = inlined_call_operand.vmem [shape: f32[24,128], index: 0, kind: input, shape index: {}]
  %s1 = inlined_call_operand.vmem [shape: f32[24,128], index: 1, kind: output, shape index: {}]
  %s2 = sld [smem:[#allocation0]]
  $region14: #{_forward_impl.2} parent=0
    _
  %s4 = ssub.s32 1, %s2
  %s5 = scalar_select 0, %s4, %s2
  // Predicated region
  $region2: #{_forward_impl.2} parent=0 // pred_check
    _
  $region3: #{_forward_impl.2} parent=0 // pred_check_branch
    %7 = sbr.rel (0) target = $region5
  $region4: #{_forward_impl.2} parent=0 // pred_region
    _
  $region5: #{_forward_impl.2} parent=0 // pred_fallthru
    _
  %v8 = vld [vmem:[%s0] sm:$0xff]
  %v9 = vtanh.pop %v8
  %v10 = vmul.f32 %v9, 16.0
  %v11 = vadd.f32 %v10, 16.0
  %12 = vst [vmem:[%s1] sm:$0xff] %v11
  %v13 = vld [vmem:[%s0 + $0x8] sm:$0xff]
  %v14 = vmul.f32 %v13, 0.5
  %v15 = vtanh.pop %v14
  %v16 = vadd.f32 %v15, 1.0
  %v17 = vmul.f32 %v16, 0.5
  %v18 = vadd.f32 %v17, 1.0
  %19 = vst [vmem:[%s1 + $0x8] sm:$0xff] %v18
  %v20 = vld [vmem:[%s0 + $0x10] sm:$0xff]
  %v21 = vmul.f32 %v20, 0.5
  %v22 = vtanh.pop %v21
  %v23 = vadd.f32 %v22, 1.0
  %v24 = vmul.f32 %v23, 0.5
  %25 = vst [vmem:[%s1 + $0x10] sm:$0xff] %v24
  // Predicated region
  $region6: #{_forward_impl.2} parent=0 // pred_check
    _
  $region7: #{_forward_impl.2} parent=0 // pred_check_branch
    %27 = sbr.rel (0) target = $region9
  $region8: #{_forward_impl.2} parent=0 // pred_region
    _
  $region9: #{_forward_impl.2} parent=0 // pred_fallthru
    _
  // Predicated region
  $region10: #{_forward_impl.2} parent=0 // pred_check
    _
  $region11: #{_forward_impl.2} parent=0 // pred_check_branch
    %29 = sbr.rel (0) target = $region13
  $region12: #{_forward_impl.2} parent=0 // pred_region
    _
  $region13: #{_forward_impl.2} parent=0 // pred_fallthru
    _

// kernel: _forward_impl.3
$region0: #{_forward_impl.3}
  #allocation0 [shape = 'u32[]', space=smem, size = 0x4, offset = 0x4, fixed_abs, tag = 'smem constant byte address 0x4 - core index']
  #allocation1 [shape = 'u32[72,128]{1,0:T(1,128)}', space=vmem, size = 0x9000, scoped, tag = 'internal scratch']
  %s0 = inlined_call_operand.vmem [shape: f32[4,8,128], index: 0, kind: input, shape index: {}]
  %s1 = inlined_call_operand.vmem [shape: f32[3,8,128], index: 1, kind: output, shape index: {}]
  %s2 = sld [smem:[#allocation0]]
  $region14: #{_forward_impl.3} parent=0
    _
  %s4 = ssub.s32 1, %s2
  %s5 = scalar_select 0, %s4, %s2
  // Predicated region
  $region2: #{_forward_impl.3} parent=0 // pred_check
    _
  $region3: #{_forward_impl.3} parent=0 // pred_check_branch
    %7 = sbr.rel (0) target = $region5
  $region4: #{_forward_impl.3} parent=0 // pred_region
    _
  $region5: #{_forward_impl.3} parent=0 // pred_fallthru
    _
  %v8 = vld [vmem:[%s0] sm:$0xff]
  %v9 = vld [vmem:[%s0 + $0x8] sm:$0xff]
  %v10 = vld [vmem:[%s0 + $0x10] sm:$0xff]
  %v11 = vld [vmem:[%s0 + $0x18] sm:$0xff]
  %v12 = vmul.f32 %v11, %v8
  %v13 = vmul.f32 %v11, %v9
  %v14 = vmul.f32 %v11, %v10
  %v15 = vsub.f32 1.0, %v11
  %v16 = vadd.f32 %v12, %v15
  %v17 = vadd.f32 %v13, %v15
  %v18 = vadd.f32 %v14, %v15
  %19 = vst [vmem:[%s1] sm:$0xff] %v16
  %20 = vst [vmem:[%s1 + $0x8] sm:$0xff] %v17
  %21 = vst [vmem:[%s1 + $0x10] sm:$0xff] %v18
  // Predicated region
  $region6: #{_forward_impl.3} parent=0 // pred_check
    _
  $region7: #{_forward_impl.3} parent=0 // pred_check_branch
    %23 = sbr.rel (0) target = $region9
  $region8: #{_forward_impl.3} parent=0 // pred_region
    _
  $region9: #{_forward_impl.3} parent=0 // pred_fallthru
    _
  // Predicated region
  $region10: #{_forward_impl.3} parent=0 // pred_check
    _
  $region11: #{_forward_impl.3} parent=0 // pred_check_branch
    %25 = sbr.rel (0) target = $region13
  $region12: #{_forward_impl.3} parent=0 // pred_region
    _
  $region13: #{_forward_impl.3} parent=0 // pred_fallthru
    _

</llo_original>
